<compile_context>
chip_gen: v7x
topology: tpu7x:2x2x1
jax: 0.10.0
libtpu: 0.0.40
codegen_flags: <defaults>
</compile_context>

<pallas_src>
import math
from functools import reduce

import jax
import jax.numpy as jnp
from jax.experimental import pallas as pl
from jax.experimental.pallas import tpu as pltpu

HID1 = 256
HID2 = 256
HEAD_ROWS = 16  # scalar head padded to 16 sublanes (native bf16 packing); row 0 real


def _mlp_kernel(x_ref, w1_ref, b1_ref, w2_ref, b2_ref, w3t_ref, b3_ref, p_ref):
    """One batch tile of Linear->Tanh->Linear->Tanh->Linear->Sigmoid.

    x_ref   : (tile_m, inputs_) f32  -- cast to bf16 here (saves an HBM pass)
    w1/w2   : bf16 weights, VMEM-resident across the grid (constant index_map)
    b1/b2   : (1, 256) f32
    w3t_ref : (HEAD_ROWS, 256) bf16, only row 0 is the real head weight
    b3_ref  : (1,) f32 scalar in SMEM
    p_ref   : (1, tile_m) f32 lane-dense output block (batch along lanes)
    """
    x_bf16 = x_ref[...].astype(jnp.bfloat16)  # VPU cast, free slot
    h1 = jnp.tanh(
        jnp.dot(x_bf16, w1_ref[...], preferred_element_type=jnp.float32)
        + b1_ref[...]
    )
    h2 = jnp.tanh(
        jnp.dot(h1.astype(jnp.bfloat16), w2_ref[...],
                preferred_element_type=jnp.float32)
        + b2_ref[...]
    )
    # Transposed head: (HEAD_ROWS, 256) x (tile_m, 256) contracted on features
    # -> (HEAD_ROWS, tile_m).  Keeps the output lane-dense; sigmoid only on the
    # single real row instead of 128 padded columns per batch row.
    logits_t = jax.lax.dot_general(
        w3t_ref[...], h2.astype(jnp.bfloat16),
        dimension_numbers=(((1,), (1,)), ((), ())),
        preferred_element_type=jnp.float32,
    )
    p_ref[...] = jax.nn.sigmoid(logits_t[0:1, :] + b3_ref[0])


def init_params(key, inputs_):
    """Deterministic init mimicking torch.nn.Linear (uniform +/- 1/sqrt(fan_in)).

    w1/w2 stored (in, out) bf16; the scalar head is stored transposed and padded
    to HEAD_ROWS rows (row 0 real) in bf16; biases stay f32.
    """
    ks = jax.random.split(key, 6)

    def lin(kw, kb, fan_in, fan_out):
        bound = 1.0 / math.sqrt(fan_in)
        w = jax.random.uniform(kw, (fan_in, fan_out), jnp.float32, -bound, bound)
        b = jax.random.uniform(kb, (1, fan_out), jnp.float32, -bound, bound)
        return w, b

    w1, b1 = lin(ks[0], ks[1], inputs_, HID1)
    w2, b2 = lin(ks[2], ks[3], HID1, HID2)
    w3, b3 = lin(ks[4], ks[5], HID2, 1)
    w3t = jnp.zeros((HEAD_ROWS, HID2), jnp.float32).at[0, :].set(w3[:, 0])
    b3s = b3.reshape(1)  # (1,) f32 scalar for SMEM
    # TODO(synk): for a v7x-only deployment, w1/w2/w3t could be stored fp8 (e4m3)
    # to halve weight DMA; kept bf16 here to preserve policy accuracy everywhere.
    return (
        w1.astype(jnp.bfloat16), b1,
        w2.astype(jnp.bfloat16), b2,
        w3t.astype(jnp.bfloat16), b3s,
    )


def _round_up(n, m):
    return ((n + m - 1) // m) * m


def _choose_tiling(batch):
    padded_b = _round_up(batch, 16)  # native bf16 sublane packing
    if padded_b < 256:
        tile_m = padded_b  # single grid step; block == full (tiny) batch
    else:
        # >= 2 grid steps so both v7x TensorCores get work; tiles are multiples
        # of 128 (MXU / lane-dense output), capped at 512 rows to amortize the
        # ~0.35us per-step overhead while staying far below the VMEM limit.
        tile_m = min(512, 128 * max(1, (padded_b // 2) // 128))
        padded_b = _round_up(padded_b, tile_m)
    return padded_b, tile_m


@jax.jit
def perceptron_policy_forward(x, params):
    """Forward pass: returns Bernoulli parameter p of shape (B, 1)."""
    w1, b1, w2, b2, w3t, b3 = params
    batch = x.shape[0]
    inputs_ = reduce(lambda a, b: a * b, x.shape[1:])

    # Keep x in f32: the kernel casts to bf16 inside VMEM, avoiding the extra
    # HBM pass a wrapper-side astype would create (this kernel is memory-bound).
    x2d = x.reshape(batch, inputs_)

    padded_b, tile_m = _choose_tiling(batch)
    if padded_b != batch:
        x2d = jnp.pad(x2d, ((0, padded_b - batch), (0, 0)))
    grid_m = padded_b // tile_m

    const_map = lambda i: (0, 0)
    in_specs = [
        # x tile, pipelined over the batch grid.  (If profiling on v6e shows
        # exposed x DMA, add pipeline_mode=pl.Buffered(3) here.)
        pl.BlockSpec((tile_m, inputs_), lambda i: (i, 0)),
        pl.BlockSpec(w1.shape, const_map),  # weights VMEM-resident across grid
        pl.BlockSpec(b1.shape, const_map),
        pl.BlockSpec(w2.shape, const_map),
        pl.BlockSpec(b2.shape, const_map),
        pl.BlockSpec(w3t.shape, const_map),
        pl.BlockSpec(memory_space=pltpu.MemorySpace.SMEM),  # b3 scalar
    ]
    # Lane-dense output: one sublane row, batch along the lane axis.
    out_specs = pl.BlockSpec((1, tile_m), lambda i: (0, i))

    flops = 2 * padded_b * (inputs_ * HID1 + HID1 * HID2 + HID2 * HEAD_ROWS)
    transcendentals = padded_b * (HID1 + HID2 + 1)
    bytes_accessed = (
        x2d.size * x2d.dtype.itemsize
        + sum(a.size * a.dtype.itemsize for a in (w1, b1, w2, b2, w3t, b3))
        + padded_b * 4
    )

    p_row = pl.pallas_call(
        _mlp_kernel,
        out_shape=jax.ShapeDtypeStruct((1, padded_b), jnp.float32),
        grid=(grid_m,),
        in_specs=in_specs,
        out_specs=out_specs,
        compiler_params=pltpu.CompilerParams(
            dimension_semantics=("parallel",),
        ),
        cost_estimate=pl.CostEstimate(
            flops=flops,
            transcendentals=transcendentals,
            bytes_accessed=bytes_accessed,
        ),
    )(x2d, w1, b1, w2, b2, w3t, b3)

    prob = p_row[0, :batch].reshape(batch, 1)  # (B, 1), matches Linear(.,1)+Sigmoid

    # TODO(synk): controller.Distribution_Controller('Binary').model_action_2_world_action
    # source is not provided; we return the Bernoulli parameter 'p' directly.
    return {"p": prob}


if __name__ == "__main__":
    key = jax.random.PRNGKey(0)
    k_x, k_p = jax.random.split(key)

    # obs_space_dims = (4, 16, 16) -> inputs_ = 1024, batch = 2
    obs_space_dims = (4, 16, 16)
    batch = 2
    inputs_ = reduce(lambda a, b: a * b, obs_space_dims)

    x = jax.random.normal(k_x, (batch,) + obs_space_dims, jnp.float32)
    params = init_params(k_p, inputs_)

    out = perceptron_policy_forward(x, params)
    p = jax.block_until_ready(out["p"])

    assert p.shape == (batch, 1)
    assert bool(jnp.all((p >= 0.0) & (p <= 1.0)))

    w1, b1, w2, b2, w3t, b3 = params
    x2d = x.reshape(batch, inputs_)

    # Matched-precision reference (bf16 matmul inputs, f32 accumulation).
    h1 = jnp.tanh(jnp.dot(x2d.astype(jnp.bfloat16), w1,
                          preferred_element_type=jnp.float32) + b1)
    h2 = jnp.tanh(jnp.dot(h1.astype(jnp.bfloat16), w2,
                          preferred_element_type=jnp.float32) + b2)
    ref_bf16 = jax.nn.sigmoid(
        jnp.dot(h2.astype(jnp.bfloat16), w3t[0:1, :].T,
                preferred_element_type=jnp.float32) + b3[0])
    assert bool(jnp.allclose(p, ref_bf16, atol=1e-3, rtol=1e-3))

    # Full-f32 reference (bounds bf16 drift vs. the f32 PyTorch module).
    h1f = jnp.tanh(x2d @ w1.astype(jnp.float32) + b1)
    h2f = jnp.tanh(h1f @ w2.astype(jnp.float32) + b2)
    ref_f32 = jax.nn.sigmoid(h2f @ w3t[0:1, :].astype(jnp.float32).T + b3[0])
    assert bool(jnp.allclose(p, ref_f32, atol=2e-2))

    print("KERNEL_OK")
</pallas_src>

<mosaic_0001>
module attributes {stable_mosaic.version = 11 : i64} {
  func.func @_mlp_kernel(%arg0: i32, %arg1: memref<16x1024xf32, #tpu.memory_space<vmem>>, %arg2: memref<1024x256xbf16, #tpu.memory_space<vmem>>, %arg3: memref<1x256xf32, #tpu.memory_space<vmem>>, %arg4: memref<256x256xbf16, #tpu.memory_space<vmem>>, %arg5: memref<1x256xf32, #tpu.memory_space<vmem>>, %arg6: memref<16x256xbf16, #tpu.memory_space<vmem>>, %arg7: memref<1xf32, #tpu.memory_space<smem>>, %arg8: memref<1x16xf32, #tpu.memory_space<vmem>>) attributes {dimension_semantics = [#tpu.dimension_semantics<parallel>], iteration_bounds = array<i64: 1>, scalar_prefetch = 0 : i64, scratch_operands = 0 : i64, tpu.core_type = #tpu.core_type<tc>, window_params = [{transform_indices = @transform_0, window_bounds = array<i64: 16, 1024>}, {pipeline_mode = #tpu.pipeline_mode<synchronous>, transform_indices = @transform_1, window_bounds = array<i64: 1024, 256>}, {pipeline_mode = #tpu.pipeline_mode<synchronous>, transform_indices = @transform_2, window_bounds = array<i64: 1, 256>}, {pipeline_mode = #tpu.pipeline_mode<synchronous>, transform_indices = @transform_3, window_bounds = array<i64: 256, 256>}, {pipeline_mode = #tpu.pipeline_mode<synchronous>, transform_indices = @transform_4, window_bounds = array<i64: 1, 256>}, {pipeline_mode = #tpu.pipeline_mode<synchronous>, transform_indices = @transform_5, window_bounds = array<i64: 16, 256>}, {transform_indices = @transform_6, window_bounds = array<i64: 1>}, {transform_indices = @transform_7, window_bounds = array<i64: 1, 16>}]} {
    %c0 = arith.constant 0 : index
    %c0_0 = arith.constant 0 : index
    %0 = vector.load %arg1[%c0, %c0_0] : memref<16x1024xf32, #tpu.memory_space<vmem>>, vector<16x1024xf32>
    %1 = arith.truncf %0 : vector<16x1024xf32> to vector<16x1024xbf16>
    %c0_1 = arith.constant 0 : index
    %c0_2 = arith.constant 0 : index
    %2 = vector.load %arg2[%c0_1, %c0_2] : memref<1024x256xbf16, #tpu.memory_space<vmem>>, vector<1024x256xbf16>
    %cst = arith.constant dense<0.000000e+00> : vector<16x256xf32>
    %3 = tpu.matmul %1, %2, %cst {dimension_numbers = #tpu.dot_dimension_numbers<[1], [0], [0], [1], [0, 0, 1, 1], [], []>} : vector<16x1024xbf16>, vector<1024x256xbf16>, vector<16x256xf32> -> vector<16x256xf32>
    %c0_3 = arith.constant 0 : index
    %c0_4 = arith.constant 0 : index
    %4 = vector.load %arg3[%c0_3, %c0_4] : memref<1x256xf32, #tpu.memory_space<vmem>>, vector<1x256xf32>
    %5 = vector.broadcast %4 : vector<1x256xf32> to vector<16x256xf32>
    %6 = arith.addf %3, %5 : vector<16x256xf32>
    %7 = math.tanh %6 : vector<16x256xf32>
    %8 = arith.truncf %7 : vector<16x256xf32> to vector<16x256xbf16>
    %c0_5 = arith.constant 0 : index
    %c0_6 = arith.constant 0 : index
    %9 = vector.load %arg4[%c0_5, %c0_6] : memref<256x256xbf16, #tpu.memory_space<vmem>>, vector<256x256xbf16>
    %cst_7 = arith.constant dense<0.000000e+00> : vector<16x256xf32>
    %10 = tpu.matmul %8, %9, %cst_7 {dimension_numbers = #tpu.dot_dimension_numbers<[1], [0], [0], [1], [0, 0, 1, 1], [], []>} : vector<16x256xbf16>, vector<256x256xbf16>, vector<16x256xf32> -> vector<16x256xf32>
    %c0_8 = arith.constant 0 : index
    %c0_9 = arith.constant 0 : index
    %11 = vector.load %arg5[%c0_8, %c0_9] : memref<1x256xf32, #tpu.memory_space<vmem>>, vector<1x256xf32>
    %12 = vector.broadcast %11 : vector<1x256xf32> to vector<16x256xf32>
    %13 = arith.addf %10, %12 : vector<16x256xf32>
    %14 = math.tanh %13 : vector<16x256xf32>
    %c0_10 = arith.constant 0 : index
    %c0_11 = arith.constant 0 : index
    %15 = vector.load %arg6[%c0_10, %c0_11] : memref<16x256xbf16, #tpu.memory_space<vmem>>, vector<16x256xbf16>
    %16 = arith.truncf %14 : vector<16x256xf32> to vector<16x256xbf16>
    %cst_12 = arith.constant dense<0.000000e+00> : vector<16x16xf32>
    %17 = tpu.matmul %15, %16, %cst_12 {dimension_numbers = #tpu.dot_dimension_numbers<[1], [1], [0], [0], [0, 0, 1, 0], [], []>} : vector<16x256xbf16>, vector<16x256xbf16>, vector<16x16xf32> -> vector<16x16xf32>
    %18 = vector.extract_strided_slice %17 {offsets = [0, 0], sizes = [1, 16], strides = [1, 1]} : vector<16x16xf32> to vector<1x16xf32>
    %c0_13 = arith.constant 0 : index
    %19 = memref.load %arg7[%c0_13] : memref<1xf32, #tpu.memory_space<smem>>
    %20 = vector.broadcast %19 : f32 to vector<1x16xf32>
    %21 = arith.addf %18, %20 : vector<1x16xf32>
    %22 = arith.negf %21 : vector<1x16xf32>
    %23 = math.exp %22 : vector<1x16xf32>
    %cst_14 = arith.constant 1.000000e+00 : f32
    %24 = vector.broadcast %cst_14 : f32 to vector<1x16xf32>
    %25 = arith.addf %24, %23 : vector<1x16xf32>
    %26 = arith.divf %24, %25 : vector<1x16xf32>
    %c0_15 = arith.constant 0 : index
    %c0_16 = arith.constant 0 : index
    %27 = vector.load %arg8[%c0_15, %c0_16] : memref<1x16xf32, #tpu.memory_space<vmem>>, vector<1x16xf32>
    tpu.vector_store %arg8[%c0_15, %c0_16], %26 {strides = array<i32>} : memref<1x16xf32, #tpu.memory_space<vmem>>, vector<1x16xf32>,
    return
  }
  func.func @transform_0(%arg0: i32) -> (i32, i32) {
    %c0_i32 = arith.constant 0 : i32
    %c0_i32_0 = arith.constant 0 : i32
    return %arg0, %c0_i32 : i32, i32
  }
  func.func @transform_1(%arg0: i32) -> (i32, i32) {
    %c0_i32 = arith.constant 0 : i32
    %c0_i32_0 = arith.constant 0 : i32
    %c0_i32_1 = arith.constant 0 : i32
    return %c0_i32, %c0_i32_0 : i32, i32
  }
  func.func @transform_2(%arg0: i32) -> (i32, i32) {
    %c0_i32 = arith.constant 0 : i32
    %c0_i32_0 = arith.constant 0 : i32
    %c0_i32_1 = arith.constant 0 : i32
    return %c0_i32, %c0_i32_0 : i32, i32
  }
  func.func @transform_3(%arg0: i32) -> (i32, i32) {
    %c0_i32 = arith.constant 0 : i32
    %c0_i32_0 = arith.constant 0 : i32
    %c0_i32_1 = arith.constant 0 : i32
    return %c0_i32, %c0_i32_0 : i32, i32
  }
  func.func @transform_4(%arg0: i32) -> (i32, i32) {
    %c0_i32 = arith.constant 0 : i32
    %c0_i32_0 = arith.constant 0 : i32
    %c0_i32_1 = arith.constant 0 : i32
    return %c0_i32, %c0_i32_0 : i32, i32
  }
  func.func @transform_5(%arg0: i32) -> (i32, i32) {
    %c0_i32 = arith.constant 0 : i32
    %c0_i32_0 = arith.constant 0 : i32
    %c0_i32_1 = arith.constant 0 : i32
    return %c0_i32, %c0_i32_0 : i32, i32
  }
  func.func @transform_6(%arg0: i32) -> i32 {
    %c0_i32 = arith.constant 0 : i32
    %c0_i32_0 = arith.constant 0 : i32
    return %c0_i32 : i32
  }
  func.func @transform_7(%arg0: i32) -> (i32, i32) {
    %c0_i32 = arith.constant 0 : i32
    %c0_i32_0 = arith.constant 0 : i32
    return %c0_i32, %arg0 : i32, i32
  }
}

</mosaic_0001>

<llo_original>
// kernel: perceptron_policy_forward.1
$region0: #{perceptron_policy_forward.1}
  #allocation0 [shape = 'u32[]', space=smem, size = 0x4, offset = 0x4, fixed_abs, tag = 'smem constant byte address 0x4 - core index']
  #allocation1 [shape = 'u32[144,128]{1,0:T(1,128)}', space=vmem, size = 0x12000, scoped, tag = 'internal scratch']
  #allocation2 [shape = 'f32[1]{0:T(128)S(6)}', space=smem, size = 0x200, scoped, tag = 'scoped memory for perceptron_policy_forward.1']
  %s0 = inlined_call_operand.vmem [shape: f32[16,1024], index: 0, kind: input, shape index: {}]
  %s1 = inlined_call_operand.hbm [shape: bf16[1024,256], index: 1, kind: input, shape index: {}]
  %s2 = inlined_call_operand.vmem [shape: f32[1,256], index: 2, kind: input, shape index: {}]
  %s3 = inlined_call_operand.vmem [shape: bf16[256,256], index: 3, kind: input, shape index: {}]
  %s4 = inlined_call_operand.vmem [shape: f32[1,256], index: 4, kind: input, shape index: {}]
  %s5 = inlined_call_operand.vmem [shape: bf16[16,256], index: 5, kind: input, shape index: {}]
  %s6 = inlined_call_operand.<no memory space> [shape: f32[1], index: 6, kind: input, shape index: {}]
  %s7 = inlined_call_operand.vmem [shape: f32[1,16], index: 7, kind: output, shape index: {}]
  %s8 = sld [smem:[#allocation0]]
  $region42: #{perceptron_policy_forward.1} parent=0
    _
  %s10 = ssub.s32 1, %s8
  %s11 = scalar_select 0, %s10, %s8
  %12 = sst [smem:[#allocation2]] %s6
  $region1: #{perceptron_policy_forward.1} parent=0
    #allocation3 [shape = 'u8[524288]{0}', space=vmem, size = 0x80000, scoped, tag = 'input window, operand 1, single buffered']
    #allocation4 [shape = 's32[1]{0}', space=sflag, size = 0x4, scoped, tag = 'scoped memory for perceptron_policy_forward.1']
    %13 = vsyncpa [#allocation4], 0
    // Predicated region
    $region2: #{perceptron_policy_forward.1} parent=1 // pred_check
      _
    $region3: #{perceptron_policy_forward.1} parent=1 // pred_check_branch
      %15 = sbr.rel (0) target = $region5
    $region4: #{perceptron_policy_forward.1} parent=1 // pred_region
      _
    $region5: #{perceptron_policy_forward.1} parent=1 // pred_fallthru
      _
    // Predicated region
    $region6: #{perceptron_policy_forward.1} parent=1 // pred_check
      _
    $region7: #{perceptron_policy_forward.1} parent=1 // pred_check_branch
      %17 = sbr.rel (0) target = $region9
    $region8: #{perceptron_policy_forward.1} parent=1 // pred_region
      %s19 = ssub.s32 16384, 16384
      %20 = vsyncadd [#allocation4], %s19
      %s21 = sshll.u32 [#allocation3], 4
      %s22 = int_to_ptr.vmem [resolvable:$true] %s21
      %27 = dma.hbm_to_vmem [thread:$0]  %s1, 16384, %s22, [#allocation4], 128, 128, 8
    $region9: #{perceptron_policy_forward.1} parent=1 // pred_fallthru
      _
    // Predicated region
    $region10: #{perceptron_policy_forward.1} parent=1 // pred_check
      _
    $region11: #{perceptron_policy_forward.1} parent=1 // pred_check_branch
      %29 = sbr.rel (0) target = $region13
    $region12: #{perceptron_policy_forward.1} parent=1 // pred_region
      _
    $region13: #{perceptron_policy_forward.1} parent=1 // pred_fallthru
      _
    // Predicated region
    $region14: #{perceptron_policy_forward.1} parent=1 // pred_check
      _
    $region15: #{perceptron_policy_forward.1} parent=1 // pred_check_branch
      %31 = sbr.rel (0) target = $region17
    $region16: #{perceptron_policy_forward.1} parent=1 // pred_region
      _
    $region17: #{perceptron_policy_forward.1} parent=1 // pred_fallthru
      _
    // Predicated region
    $region18: #{perceptron_policy_forward.1} parent=1 // pred_check
      _
    $region19: #{perceptron_policy_forward.1} parent=1 // pred_check_branch
      %33 = sbr.rel (0) target = $region21
    $region20: #{perceptron_policy_forward.1} parent=1 // pred_region
      _
    $region21: #{perceptron_policy_forward.1} parent=1 // pred_fallthru
      _
    // Predicated region
    $region22: #{perceptron_policy_forward.1} parent=1 // pred_check
      _
    $region23: #{perceptron_policy_forward.1} parent=1 // pred_check_branch
      %35 = sbr.rel (0) target = $region25
    $region24: #{perceptron_policy_forward.1} parent=1 // pred_region
      _
    $region25: #{perceptron_policy_forward.1} parent=1 // pred_fallthru
      _
    // Predicated region
    $region26: #{perceptron_policy_forward.1} parent=1 // pred_check
      _
    $region27: #{perceptron_policy_forward.1} parent=1 // pred_check_branch
      %37 = sbr.rel (0) target = $region29
    $region28: #{perceptron_policy_forward.1} parent=1 // pred_region
      _
    $region29: #{perceptron_policy_forward.1} parent=1 // pred_fallthru
      _
    // Predicated region
    $region30: #{perceptron_policy_forward.1} parent=1 // pred_check
      _
    $region31: #{perceptron_policy_forward.1} parent=1 // pred_check_branch
      %39 = sbr.rel (0) target = $region33
    $region32: #{perceptron_policy_forward.1} parent=1 // pred_region
      %40 = dma.done [#allocation4], 16384
    $region33: #{perceptron_policy_forward.1} parent=1 // pred_fallthru
      _
    %v42 = vld [vmem:[%s0] sm:$0xff]
    %v43 = vld [vmem:[%s0 + $0x8] sm:$0xff]
    %v44 = vld [vmem:[%s0 + $0x10] sm:$0xff]
    %v45 = vld [vmem:[%s0 + $0x18] sm:$0xff]
    %v46 = vld [vmem:[%s0 + $0x20] sm:$0xff]
    %v47 = vld [vmem:[%s0 + $0x28] sm:$0xff]
    %v48 = vld [vmem:[%s0 + $0x30] sm:$0xff]
    %v49 = vld [vmem:[%s0 + $0x38] sm:$0xff]
    %v50 = vld [vmem:[%s0 + $0x40] sm:$0xff]
    %v51 = vld [vmem:[%s0 + $0x48] sm:$0xff]
    %v52 = vld [vmem:[%s0 + $0x50] sm:$0xff]
    %v53 = vld [vmem:[%s0 + $0x58] sm:$0xff]
    %v54 = vld [vmem:[%s0 + $0x60] sm:$0xff]
    %v55 = vld [vmem:[%s0 + $0x68] sm:$0xff]
    %v56 = vld [vmem:[%s0 + $0x70] sm:$0xff]
    %v57 = vld [vmem:[%s0 + $0x78] sm:$0xff]
    %v58 = vpack.c.bf16 %v50, %v42
    %v59 = vpack.c.bf16 %v51, %v43
    %v60 = vpack.c.bf16 %v52, %v44
    %v61 = vpack.c.bf16 %v53, %v45
    %v62 = vpack.c.bf16 %v54, %v46
    %v63 = vpack.c.bf16 %v55, %v47
    %v64 = vpack.c.bf16 %v56, %v48
    %v65 = vpack.c.bf16 %v57, %v49
    %v66 = vld [vmem:[#allocation3] sm:$0xff]
    %v67 = vld [vmem:[#allocation3 + $0x8] sm:$0xff]
    %v68 = vld [vmem:[#allocation3 + $0x10] sm:$0xff]
    %v69 = vld [vmem:[#allocation3 + $0x18] sm:$0xff]
    %v70 = vld [vmem:[#allocation3 + $0x20] sm:$0xff]
    %v71 = vld [vmem:[#allocation3 + $0x28] sm:$0xff]
    %v72 = vld [vmem:[#allocation3 + $0x30] sm:$0xff]
    %v73 = vld [vmem:[#allocation3 + $0x38] sm:$0xff]
    %v74 = vld [vmem:[#allocation3 + $0x40] sm:$0xff]
    %v75 = vld [vmem:[#allocation3 + $0x48] sm:$0xff]
    %v76 = vld [vmem:[#allocation3 + $0x50] sm:$0xff]
    %v77 = vld [vmem:[#allocation3 + $0x58] sm:$0xff]
    %v78 = vld [vmem:[#allocation3 + $0x60] sm:$0xff]
    %v79 = vld [vmem:[#allocation3 + $0x68] sm:$0xff]
    %v80 = vld [vmem:[#allocation3 + $0x70] sm:$0xff]
    %v81 = vld [vmem:[#allocation3 + $0x78] sm:$0xff]
    %v82 = vld [vmem:[#allocation3 + $0x80] sm:$0xff]
    %v83 = vld [vmem:[#allocation3 + $0x88] sm:$0xff]
    %v84 = vld [vmem:[#allocation3 + $0x90] sm:$0xff]
    %v85 = vld [vmem:[#allocation3 + $0x98] sm:$0xff]
    %v86 = vld [vmem:[#allocation3 + $0xa0] sm:$0xff]
    %v87 = vld [vmem:[#allocation3 + $0xa8] sm:$0xff]
    %v88 = vld [vmem:[#allocation3 + $0xb0] sm:$0xff]
    %v89 = vld [vmem:[#allocation3 + $0xb8] sm:$0xff]
    %v90 = vld [vmem:[#allocation3 + $0xc0] sm:$0xff]
    %v91 = vld [vmem:[#allocation3 + $0xc8] sm:$0xff]
    %v92 = vld [vmem:[#allocation3 + $0xd0] sm:$0xff]
    %v93 = vld [vmem:[#allocation3 + $0xd8] sm:$0xff]
    %v94 = vld [vmem:[#allocation3 + $0xe0] sm:$0xff]
    %v95 = vld [vmem:[#allocation3 + $0xe8] sm:$0xff]
    %v96 = vld [vmem:[#allocation3 + $0xf0] sm:$0xff]
    %v97 = vld [vmem:[#allocation3 + $0xf8] sm:$0xff]
    %v98 = vld [vmem:[#allocation3 + $0x100] sm:$0xff]
    %v99 = vld [vmem:[#allocation3 + $0x108] sm:$0xff]
    %v100 = vld [vmem:[#allocation3 + $0x110] sm:$0xff]
    %v101 = vld [vmem:[#allocation3 + $0x118] sm:$0xff]
    %v102 = vld [vmem:[#allocation3 + $0x120] sm:$0xff]
    %v103 = vld [vmem:[#allocation3 + $0x128] sm:$0xff]
    %v104 = vld [vmem:[#allocation3 + $0x130] sm:$0xff]
    %v105 = vld [vmem:[#allocation3 + $0x138] sm:$0xff]
    %v106 = vld [vmem:[#allocation3 + $0x140] sm:$0xff]
    %v107 = vld [vmem:[#allocation3 + $0x148] sm:$0xff]
    %v108 = vld [vmem:[#allocation3 + $0x150] sm:$0xff]
    %v109 = vld [vmem:[#allocation3 + $0x158] sm:$0xff]
    %v110 = vld [vmem:[#allocation3 + $0x160] sm:$0xff]
    %v111 = vld [vmem:[#allocation3 + $0x168] sm:$0xff]
    %v112 = vld [vmem:[#allocation3 + $0x170] sm:$0xff]
    %v113 = vld [vmem:[#allocation3 + $0x178] sm:$0xff]
    %v114 = vld [vmem:[#allocation3 + $0x180] sm:$0xff]
    %v115 = vld [vmem:[#allocation3 + $0x188] sm:$0xff]
    %v116 = vld [vmem:[#allocation3 + $0x190] sm:$0xff]
    %v117 = vld [vmem:[#allocation3 + $0x198] sm:$0xff]
    %v118 = vld [vmem:[#allocation3 + $0x1a0] sm:$0xff]
    %v119 = vld [vmem:[#allocation3 + $0x1a8] sm:$0xff]
    %v120 = vld [vmem:[#allocation3 + $0x1b0] sm:$0xff]
    %v121 = vld [vmem:[#allocation3 + $0x1b8] sm:$0xff]
    %v122 = vld [vmem:[#allocation3 + $0x1c0] sm:$0xff]
    %v123 = vld [vmem:[#allocation3 + $0x1c8] sm:$0xff]
    %v124 = vld [vmem:[#allocation3 + $0x1d0] sm:$0xff]
    %v125 = vld [vmem:[#allocation3 + $0x1d8] sm:$0xff]
    %v126 = vld [vmem:[#allocation3 + $0x1e0] sm:$0xff]
    %v127 = vld [vmem:[#allocation3 + $0x1e8] sm:$0xff]
    %v128 = vld [vmem:[#allocation3 + $0x1f0] sm:$0xff]
    %v129 = vld [vmem:[#allocation3 + $0x1f8] sm:$0xff]
    %v130 = vld [vmem:[#allocation3 + $0x200] sm:$0xff]
    %v131 = vld [vmem:[#allocation3 + $0x208] sm:$0xff]
    %v132 = vld [vmem:[#allocation3 + $0x210] sm:$0xff]
    %v133 = vld [vmem:[#allocation3 + $0x218] sm:$0xff]
    %v134 = vld [vmem:[#allocation3 + $0x220] sm:$0xff]
    %v135 = vld [vmem:[#allocation3 + $0x228] sm:$0xff]
    %v136 = vld [vmem:[#allocation3 + $0x230] sm:$0xff]
    %v137 = vld [vmem:[#allocation3 + $0x238] sm:$0xff]
    %v138 = vld [vmem:[#allocation3 + $0x240] sm:$0xff]
    %v139 = vld [vmem:[#allocation3 + $0x248] sm:$0xff]
    %v140 = vld [vmem:[#allocation3 + $0x250] sm:$0xff]
    %v141 = vld [vmem:[#allocation3 + $0x258] sm:$0xff]
    %v142 = vld [vmem:[#allocation3 + $0x260] sm:$0xff]
    %v143 = vld [vmem:[#allocation3 + $0x268] sm:$0xff]
    %v144 = vld [vmem:[#allocation3 + $0x270] sm:$0xff]
    %v145 = vld [vmem:[#allocation3 + $0x278] sm:$0xff]
    %v146 = vld [vmem:[#allocation3 + $0x280] sm:$0xff]
    %v147 = vld [vmem:[#allocation3 + $0x288] sm:$0xff]
    %v148 = vld [vmem:[#allocation3 + $0x290] sm:$0xff]
    %v149 = vld [vmem:[#allocation3 + $0x298] sm:$0xff]
    %v150 = vld [vmem:[#allocation3 + $0x2a0] sm:$0xff]
    %v151 = vld [vmem:[#allocation3 + $0x2a8] sm:$0xff]
    %v152 = vld [vmem:[#allocation3 + $0x2b0] sm:$0xff]
    %v153 = vld [vmem:[#allocation3 + $0x2b8] sm:$0xff]
    %v154 = vld [vmem:[#allocation3 + $0x2c0] sm:$0xff]
    %v155 = vld [vmem:[#allocation3 + $0x2c8] sm:$0xff]
    %v156 = vld [vmem:[#allocation3 + $0x2d0] sm:$0xff]
    %v157 = vld [vmem:[#allocation3 + $0x2d8] sm:$0xff]
    %v158 = vld [vmem:[#allocation3 + $0x2e0] sm:$0xff]
    %v159 = vld [vmem:[#allocation3 + $0x2e8] sm:$0xff]
    %v160 = vld [vmem:[#allocation3 + $0x2f0] sm:$0xff]
    %v161 = vld [vmem:[#allocation3 + $0x2f8] sm:$0xff]
    %v162 = vld [vmem:[#allocation3 + $0x300] sm:$0xff]
    %v163 = vld [vmem:[#allocation3 + $0x308] sm:$0xff]
    %v164 = vld [vmem:[#allocation3 + $0x310] sm:$0xff]
    %v165 = vld [vmem:[#allocation3 + $0x318] sm:$0xff]
    %v166 = vld [vmem:[#allocation3 + $0x320] sm:$0xff]
    %v167 = vld [vmem:[#allocation3 + $0x328] sm:$0xff]
    %v168 = vld [vmem:[#allocation3 + $0x330] sm:$0xff]
    %v169 = vld [vmem:[#allocation3 + $0x338] sm:$0xff]
    %v170 = vld [vmem:[#allocation3 + $0x340] sm:$0xff]
    %v171 = vld [vmem:[#allocation3 + $0x348] sm:$0xff]
    %v172 = vld [vmem:[#allocation3 + $0x350] sm:$0xff]
    %v173 = vld [vmem:[#allocation3 + $0x358] sm:$0xff]
    %v174 = vld [vmem:[#allocation3 + $0x360] sm:$0xff]
    %v175 = vld [vmem:[#allocation3 + $0x368] sm:$0xff]
    %v176 = vld [vmem:[#allocation3 + $0x370] sm:$0xff]
    %v177 = vld [vmem:[#allocation3 + $0x378] sm:$0xff]
    %v178 = vld [vmem:[#allocation3 + $0x380] sm:$0xff]
    %v179 = vld [vmem:[#allocation3 + $0x388] sm:$0xff]
    %v180 = vld [vmem:[#allocation3 + $0x390] sm:$0xff]
    %v181 = vld [vmem:[#allocation3 + $0x398] sm:$0xff]
    %v182 = vld [vmem:[#allocation3 + $0x3a0] sm:$0xff]
    %v183 = vld [vmem:[#allocation3 + $0x3a8] sm:$0xff]
    %v184 = vld [vmem:[#allocation3 + $0x3b0] sm:$0xff]
    %v185 = vld [vmem:[#allocation3 + $0x3b8] sm:$0xff]
    %v186 = vld [vmem:[#allocation3 + $0x3c0] sm:$0xff]
    %v187 = vld [vmem:[#allocation3 + $0x3c8] sm:$0xff]
    %v188 = vld [vmem:[#allocation3 + $0x3d0] sm:$0xff]
    %v189 = vld [vmem:[#allocation3 + $0x3d8] sm:$0xff]
    %v190 = vld [vmem:[#allocation3 + $0x3e0] sm:$0xff]
    %v191 = vld [vmem:[#allocation3 + $0x3e8] sm:$0xff]
    %v192 = vld [vmem:[#allocation3 + $0x3f0] sm:$0xff]
    %v193 = vld [vmem:[#allocation3 + $0x3f8] sm:$0xff]
    %v194 = vld [vmem:[%s2] sm:$0x3]
    %v196 = vlaneseq
    %v197 = vshrl.u32 %v196, 7
    %v198 = vsub.s32 0, %v197
    %v199 = vrot.slane %v194, %v198
    %v200 = vlaneseq
    %v201 = vshrl.u32 %v200, 7
    %v202 = vsub.s32 1, %v201
    %v203 = vrot.slane %v194, %v202
    %v334 = vunpack.c.l.b16 %v66
    %v335 = vunpack.c.h.b16 %v66
    %v336 = vunpack.c.l.b16 %v67
    %v337 = vunpack.c.h.b16 %v67
    %v338 = vunpack.c.l.b16 %v68
    %v339 = vunpack.c.h.b16 %v68
    %v340 = vunpack.c.l.b16 %v69
    %v341 = vunpack.c.h.b16 %v69
    %v342 = vunpack.c.l.b16 %v70
    %v343 = vunpack.c.h.b16 %v70
    %v344 = vunpack.c.l.b16 %v71
    %v345 = vunpack.c.h.b16 %v71
    %v346 = vunpack.c.l.b16 %v72
    %v347 = vunpack.c.h.b16 %v72
    %v348 = vunpack.c.l.b16 %v73
    %v349 = vunpack.c.h.b16 %v73
    %v350 = vunpack.c.l.b16 %v74
    %v351 = vunpack.c.h.b16 %v74
    %v352 = vunpack.c.l.b16 %v75
    %v353 = vunpack.c.h.b16 %v75
    %v354 = vunpack.c.l.b16 %v76
    %v355 = vunpack.c.h.b16 %v76
    %v356 = vunpack.c.l.b16 %v77
    %v357 = vunpack.c.h.b16 %v77
    %v358 = vunpack.c.l.b16 %v78
    %v359 = vunpack.c.h.b16 %v78
    %v360 = vunpack.c.l.b16 %v79
    %v361 = vunpack.c.h.b16 %v79
    %v362 = vunpack.c.l.b16 %v80
    %v363 = vunpack.c.h.b16 %v80
    %v364 = vunpack.c.l.b16 %v81
    %v365 = vunpack.c.h.b16 %v81
    %v366 = vunpack.c.l.b16 %v82
    %v367 = vunpack.c.h.b16 %v82
    %v368 = vunpack.c.l.b16 %v83
    %v369 = vunpack.c.h.b16 %v83
    %v370 = vunpack.c.l.b16 %v84
    %v371 = vunpack.c.h.b16 %v84
    %v372 = vunpack.c.l.b16 %v85
    %v373 = vunpack.c.h.b16 %v85
    %v374 = vunpack.c.l.b16 %v86
    %v375 = vunpack.c.h.b16 %v86
    %v376 = vunpack.c.l.b16 %v87
    %v377 = vunpack.c.h.b16 %v87
    %v378 = vunpack.c.l.b16 %v88
    %v379 = vunpack.c.h.b16 %v88
    %v380 = vunpack.c.l.b16 %v89
    %v381 = vunpack.c.h.b16 %v89
    %v382 = vunpack.c.l.b16 %v90
    %v383 = vunpack.c.h.b16 %v90
    %v384 = vunpack.c.l.b16 %v91
    %v385 = vunpack.c.h.b16 %v91
    %v386 = vunpack.c.l.b16 %v92
    %v387 = vunpack.c.h.b16 %v92
    %v388 = vunpack.c.l.b16 %v93
    %v389 = vunpack.c.h.b16 %v93
    %v390 = vunpack.c.l.b16 %v94
    %v391 = vunpack.c.h.b16 %v94
    %v392 = vunpack.c.l.b16 %v95
    %v393 = vunpack.c.h.b16 %v95
    %v394 = vunpack.c.l.b16 %v96
    %v395 = vunpack.c.h.b16 %v96
    %v396 = vunpack.c.l.b16 %v97
    %v397 = vunpack.c.h.b16 %v97
    %v398 = vunpack.c.l.b16 %v98
    %v399 = vunpack.c.h.b16 %v98
    %v400 = vunpack.c.l.b16 %v99
    %v401 = vunpack.c.h.b16 %v99
    %v402 = vunpack.c.l.b16 %v100
    %v403 = vunpack.c.h.b16 %v100
    %v404 = vunpack.c.l.b16 %v101
    %v405 = vunpack.c.h.b16 %v101
    %v406 = vunpack.c.l.b16 %v102
    %v407 = vunpack.c.h.b16 %v102
    %v408 = vunpack.c.l.b16 %v103
    %v409 = vunpack.c.h.b16 %v103
    %v410 = vunpack.c.l.b16 %v104
    %v411 = vunpack.c.h.b16 %v104
    %v412 = vunpack.c.l.b16 %v105
    %v413 = vunpack.c.h.b16 %v105
    %v414 = vunpack.c.l.b16 %v106
    %v415 = vunpack.c.h.b16 %v106
    %v416 = vunpack.c.l.b16 %v107
    %v417 = vunpack.c.h.b16 %v107
    %v418 = vunpack.c.l.b16 %v108
    %v419 = vunpack.c.h.b16 %v108
    %v420 = vunpack.c.l.b16 %v109
    %v421 = vunpack.c.h.b16 %v109
    %v422 = vunpack.c.l.b16 %v110
    %v423 = vunpack.c.h.b16 %v110
    %v424 = vunpack.c.l.b16 %v111
    %v425 = vunpack.c.h.b16 %v111
    %v426 = vunpack.c.l.b16 %v112
    %v427 = vunpack.c.h.b16 %v112
    %v428 = vunpack.c.l.b16 %v113
    %v429 = vunpack.c.h.b16 %v113
    %v430 = vunpack.c.l.b16 %v114
    %v431 = vunpack.c.h.b16 %v114
    %v432 = vunpack.c.l.b16 %v115
    %v433 = vunpack.c.h.b16 %v115
    %v434 = vunpack.c.l.b16 %v116
    %v435 = vunpack.c.h.b16 %v116
    %v436 = vunpack.c.l.b16 %v117
    %v437 = vunpack.c.h.b16 %v117
    %v438 = vunpack.c.l.b16 %v118
    %v439 = vunpack.c.h.b16 %v118
    %v440 = vunpack.c.l.b16 %v119
    %v441 = vunpack.c.h.b16 %v119
    %v442 = vunpack.c.l.b16 %v120
    %v443 = vunpack.c.h.b16 %v120
    %v444 = vunpack.c.l.b16 %v121
    %v445 = vunpack.c.h.b16 %v121
    %v446 = vunpack.c.l.b16 %v122
    %v447 = vunpack.c.h.b16 %v122
    %v448 = vunpack.c.l.b16 %v123
    %v449 = vunpack.c.h.b16 %v123
    %v450 = vunpack.c.l.b16 %v124
    %v451 = vunpack.c.h.b16 %v124
    %v452 = vunpack.c.l.b16 %v125
    %v453 = vunpack.c.h.b16 %v125
    %v454 = vunpack.c.l.b16 %v126
    %v455 = vunpack.c.h.b16 %v126
    %v456 = vunpack.c.l.b16 %v127
    %v457 = vunpack.c.h.b16 %v127
    %v458 = vunpack.c.l.b16 %v128
    %v459 = vunpack.c.h.b16 %v128
    %v460 = vunpack.c.l.b16 %v129
    %v461 = vunpack.c.h.b16 %v129
    %v462 = vunpack.c.l.b16 %v130
    %v463 = vunpack.c.h.b16 %v130
    %v464 = vunpack.c.l.b16 %v131
    %v465 = vunpack.c.h.b16 %v131
    %v466 = vunpack.c.l.b16 %v132
    %v467 = vunpack.c.h.b16 %v132
    %v468 = vunpack.c.l.b16 %v133
    %v469 = vunpack.c.h.b16 %v133
    %v470 = vunpack.c.l.b16 %v134
    %v471 = vunpack.c.h.b16 %v134
    %v472 = vunpack.c.l.b16 %v135
    %v473 = vunpack.c.h.b16 %v135
    %v474 = vunpack.c.l.b16 %v136
    %v475 = vunpack.c.h.b16 %v136
    %v476 = vunpack.c.l.b16 %v137
    %v477 = vunpack.c.h.b16 %v137
    %v478 = vunpack.c.l.b16 %v138
    %v479 = vunpack.c.h.b16 %v138
    %v480 = vunpack.c.l.b16 %v139
    %v481 = vunpack.c.h.b16 %v139
    %v482 = vunpack.c.l.b16 %v140
    %v483 = vunpack.c.h.b16 %v140
    %v484 = vunpack.c.l.b16 %v141
    %v485 = vunpack.c.h.b16 %v141
    %v486 = vunpack.c.l.b16 %v142
    %v487 = vunpack.c.h.b16 %v142
    %v488 = vunpack.c.l.b16 %v143
    %v489 = vunpack.c.h.b16 %v143
    %v490 = vunpack.c.l.b16 %v144
    %v491 = vunpack.c.h.b16 %v144
    %v492 = vunpack.c.l.b16 %v145
    %v493 = vunpack.c.h.b16 %v145
    %v494 = vunpack.c.l.b16 %v146
    %v495 = vunpack.c.h.b16 %v146
    %v496 = vunpack.c.l.b16 %v147
    %v497 = vunpack.c.h.b16 %v147
    %v498 = vunpack.c.l.b16 %v148
    %v499 = vunpack.c.h.b16 %v148
    %v500 = vunpack.c.l.b16 %v149
    %v501 = vunpack.c.h.b16 %v149
    %v502 = vunpack.c.l.b16 %v150
    %v503 = vunpack.c.h.b16 %v150
    %v504 = vunpack.c.l.b16 %v151
    %v505 = vunpack.c.h.b16 %v151
    %v506 = vunpack.c.l.b16 %v152
    %v507 = vunpack.c.h.b16 %v152
    %v508 = vunpack.c.l.b16 %v153
    %v509 = vunpack.c.h.b16 %v153
    %v510 = vunpack.c.l.b16 %v154
    %v511 = vunpack.c.h.b16 %v154
    %v512 = vunpack.c.l.b16 %v155
    %v513 = vunpack.c.h.b16 %v155
    %v514 = vunpack.c.l.b16 %v156
    %v515 = vunpack.c.h.b16 %v156
    %v516 = vunpack.c.l.b16 %v157
    %v517 = vunpack.c.h.b16 %v157
    %v518 = vunpack.c.l.b16 %v158
    %v519 = vunpack.c.h.b16 %v158
    %v520 = vunpack.c.l.b16 %v159
    %v521 = vunpack.c.h.b16 %v159
    %v522 = vunpack.c.l.b16 %v160
    %v523 = vunpack.c.h.b16 %v160
    %v524 = vunpack.c.l.b16 %v161
    %v525 = vunpack.c.h.b16 %v161
    %v526 = vunpack.c.l.b16 %v162
    %v527 = vunpack.c.h.b16 %v162
    %v528 = vunpack.c.l.b16 %v163
    %v529 = vunpack.c.h.b16 %v163
    %v530 = vunpack.c.l.b16 %v164
    %v531 = vunpack.c.h.b16 %v164
    %v532 = vunpack.c.l.b16 %v165
    %v533 = vunpack.c.h.b16 %v165
    %v534 = vunpack.c.l.b16 %v166
    %v535 = vunpack.c.h.b16 %v166
    %v536 = vunpack.c.l.b16 %v167
    %v537 = vunpack.c.h.b16 %v167
    %v538 = vunpack.c.l.b16 %v168
    %v539 = vunpack.c.h.b16 %v168
    %v540 = vunpack.c.l.b16 %v169
    %v541 = vunpack.c.h.b16 %v169
    %v542 = vunpack.c.l.b16 %v170
    %v543 = vunpack.c.h.b16 %v170
    %v544 = vunpack.c.l.b16 %v171
    %v545 = vunpack.c.h.b16 %v171
    %v546 = vunpack.c.l.b16 %v172
    %v547 = vunpack.c.h.b16 %v172
    %v548 = vunpack.c.l.b16 %v173
    %v549 = vunpack.c.h.b16 %v173
    %v550 = vunpack.c.l.b16 %v174
    %v551 = vunpack.c.h.b16 %v174
    %v552 = vunpack.c.l.b16 %v175
    %v553 = vunpack.c.h.b16 %v175
    %v554 = vunpack.c.l.b16 %v176
    %v555 = vunpack.c.h.b16 %v176
    %v556 = vunpack.c.l.b16 %v177
    %v557 = vunpack.c.h.b16 %v177
    %v558 = vunpack.c.l.b16 %v178
    %v559 = vunpack.c.h.b16 %v178
    %v560 = vunpack.c.l.b16 %v179
    %v561 = vunpack.c.h.b16 %v179
    %v562 = vunpack.c.l.b16 %v180
    %v563 = vunpack.c.h.b16 %v180
    %v564 = vunpack.c.l.b16 %v181
    %v565 = vunpack.c.h.b16 %v181
    %v566 = vunpack.c.l.b16 %v182
    %v567 = vunpack.c.h.b16 %v182
    %v568 = vunpack.c.l.b16 %v183
    %v569 = vunpack.c.h.b16 %v183
    %v570 = vunpack.c.l.b16 %v184
    %v571 = vunpack.c.h.b16 %v184
    %v572 = vunpack.c.l.b16 %v185
    %v573 = vunpack.c.h.b16 %v185
    %v574 = vunpack.c.l.b16 %v186
    %v575 = vunpack.c.h.b16 %v186
    %v576 = vunpack.c.l.b16 %v187
    %v577 = vunpack.c.h.b16 %v187
    %v578 = vunpack.c.l.b16 %v188
    %v579 = vunpack.c.h.b16 %v188
    %v580 = vunpack.c.l.b16 %v189
    %v581 = vunpack.c.h.b16 %v189
    %v582 = vunpack.c.l.b16 %v190
    %v583 = vunpack.c.h.b16 %v190
    %v584 = vunpack.c.l.b16 %v191
    %v585 = vunpack.c.h.b16 %v191
    %v586 = vunpack.c.l.b16 %v192
    %v587 = vunpack.c.h.b16 %v192
    %v588 = vunpack.c.l.b16 %v193
    %v589 = vunpack.c.h.b16 %v193
    %v590 = vpack.c.b16 %v336, %v334
    %v591 = vpack.c.b16 %v337, %v335
    %v592 = vpack.c.b16 %v340, %v338
    %v593 = vpack.c.b16 %v341, %v339
    %v594 = vpack.c.b16 %v344, %v342
    %v595 = vpack.c.b16 %v345, %v343
    %v596 = vpack.c.b16 %v348, %v346
    %v597 = vpack.c.b16 %v349, %v347
    %v598 = vpack.c.b16 %v352, %v350
    %v599 = vpack.c.b16 %v353, %v351
    %v600 = vpack.c.b16 %v356, %v354
    %v601 = vpack.c.b16 %v357, %v355
    %v602 = vpack.c.b16 %v360, %v358
    %v603 = vpack.c.b16 %v361, %v359
    %v604 = vpack.c.b16 %v364, %v362
    %v605 = vpack.c.b16 %v365, %v363
    %v606 = vpack.c.b16 %v368, %v366
    %v607 = vpack.c.b16 %v369, %v367
    %v608 = vpack.c.b16 %v372, %v370
    %v609 = vpack.c.b16 %v373, %v371
    %v610 = vpack.c.b16 %v376, %v374
    %v611 = vpack.c.b16 %v377, %v375
    %v612 = vpack.c.b16 %v380, %v378
    %v613 = vpack.c.b16 %v381, %v379
    %v614 = vpack.c.b16 %v384, %v382
    %v615 = vpack.c.b16 %v385, %v383
    %v616 = vpack.c.b16 %v388, %v386
    %v617 = vpack.c.b16 %v389, %v387
    %v618 = vpack.c.b16 %v392, %v390
    %v619 = vpack.c.b16 %v393, %v391
    %v620 = vpack.c.b16 %v396, %v394
    %v621 = vpack.c.b16 %v397, %v395
    %v622 = vpack.c.b16 %v400, %v398
    %v623 = vpack.c.b16 %v401, %v399
    %v624 = vpack.c.b16 %v404, %v402
    %v625 = vpack.c.b16 %v405, %v403
    %v626 = vpack.c.b16 %v408, %v406
    %v627 = vpack.c.b16 %v409, %v407
    %v628 = vpack.c.b16 %v412, %v410
    %v629 = vpack.c.b16 %v413, %v411
    %v630 = vpack.c.b16 %v416, %v414
    %v631 = vpack.c.b16 %v417, %v415
    %v632 = vpack.c.b16 %v420, %v418
    %v633 = vpack.c.b16 %v421, %v419
    %v634 = vpack.c.b16 %v424, %v422
    %v635 = vpack.c.b16 %v425, %v423
    %v636 = vpack.c.b16 %v428, %v426
    %v637 = vpack.c.b16 %v429, %v427
    %v638 = vpack.c.b16 %v432, %v430
    %v639 = vpack.c.b16 %v433, %v431
    %v640 = vpack.c.b16 %v436, %v434
    %v641 = vpack.c.b16 %v437, %v435
    %v642 = vpack.c.b16 %v440, %v438
    %v643 = vpack.c.b16 %v441, %v439
    %v644 = vpack.c.b16 %v444, %v442
    %v645 = vpack.c.b16 %v445, %v443
    %v646 = vpack.c.b16 %v448, %v446
    %v647 = vpack.c.b16 %v449, %v447
    %v648 = vpack.c.b16 %v452, %v450
    %v649 = vpack.c.b16 %v453, %v451
    %v650 = vpack.c.b16 %v456, %v454
    %v651 = vpack.c.b16 %v457, %v455
    %v652 = vpack.c.b16 %v460, %v458
    %v653 = vpack.c.b16 %v461, %v459
    %v654 = vpack.c.b16 %v464, %v462
    %v655 = vpack.c.b16 %v465, %v463
    %v656 = vpack.c.b16 %v468, %v466
    %v657 = vpack.c.b16 %v469, %v467
    %v658 = vpack.c.b16 %v472, %v470
    %v659 = vpack.c.b16 %v473, %v471
    %v660 = vpack.c.b16 %v476, %v474
    %v661 = vpack.c.b16 %v477, %v475
    %v662 = vpack.c.b16 %v480, %v478
    %v663 = vpack.c.b16 %v481, %v479
    %v664 = vpack.c.b16 %v484, %v482
    %v665 = vpack.c.b16 %v485, %v483
    %v666 = vpack.c.b16 %v488, %v486
    %v667 = vpack.c.b16 %v489, %v487
    %v668 = vpack.c.b16 %v492, %v490
    %v669 = vpack.c.b16 %v493, %v491
    %v670 = vpack.c.b16 %v496, %v494
    %v671 = vpack.c.b16 %v497, %v495
    %v672 = vpack.c.b16 %v500, %v498
    %v673 = vpack.c.b16 %v501, %v499
    %v674 = vpack.c.b16 %v504, %v502
    %v675 = vpack.c.b16 %v505, %v503
    %v676 = vpack.c.b16 %v508, %v506
    %v677 = vpack.c.b16 %v509, %v507
    %v678 = vpack.c.b16 %v512, %v510
    %v679 = vpack.c.b16 %v513, %v511
    %v680 = vpack.c.b16 %v516, %v514
    %v681 = vpack.c.b16 %v517, %v515
    %v682 = vpack.c.b16 %v520, %v518
    %v683 = vpack.c.b16 %v521, %v519
    %v684 = vpack.c.b16 %v524, %v522
    %v685 = vpack.c.b16 %v525, %v523
    %v686 = vpack.c.b16 %v528, %v526
    %v687 = vpack.c.b16 %v529, %v527
    %v688 = vpack.c.b16 %v532, %v530
    %v689 = vpack.c.b16 %v533, %v531
    %v690 = vpack.c.b16 %v536, %v534
    %v691 = vpack.c.b16 %v537, %v535
    %v692 = vpack.c.b16 %v540, %v538
    %v693 = vpack.c.b16 %v541, %v539
    %v694 = vpack.c.b16 %v544, %v542
    %v695 = vpack.c.b16 %v545, %v543
    %v696 = vpack.c.b16 %v548, %v546
    %v697 = vpack.c.b16 %v549, %v547
    %v698 = vpack.c.b16 %v552, %v550
    %v699 = vpack.c.b16 %v553, %v551
    %v700 = vpack.c.b16 %v556, %v554
    %v701 = vpack.c.b16 %v557, %v555
    %v702 = vpack.c.b16 %v560, %v558
    %v703 = vpack.c.b16 %v561, %v559
    %v704 = vpack.c.b16 %v564, %v562
    %v705 = vpack.c.b16 %v565, %v563
    %v706 = vpack.c.b16 %v568, %v566
    %v707 = vpack.c.b16 %v569, %v567
    %v708 = vpack.c.b16 %v572, %v570
    %v709 = vpack.c.b16 %v573, %v571
    %v710 = vpack.c.b16 %v576, %v574
    %v711 = vpack.c.b16 %v577, %v575
    %v712 = vpack.c.b16 %v580, %v578
    %v713 = vpack.c.b16 %v581, %v579
    %v714 = vpack.c.b16 %v584, %v582
    %v715 = vpack.c.b16 %v585, %v583
    %v716 = vpack.c.b16 %v588, %v586
    %v717 = vpack.c.b16 %v589, %v587
    %846 = vmatprep.subr.bf16.mxu0 %v591
    %847 = vmatpush1.bf16.msra.mxu0 %v590
    %848 = vmatprep.subr.bf16.mxu0 %v593
    %849 = vmatpush1.bf16.msra.mxu0 %v592
    %850 = vmatprep.subr.bf16.mxu0 %v595
    %851 = vmatpush1.bf16.msra.mxu0 %v594
    %852 = vmatprep.subr.bf16.mxu0 %v597
    %853 = vmatpush1.bf16.msra.mxu0 %v596
    %854 = vmatprep.subr.bf16.mxu0 %v599
    %855 = vmatpush1.bf16.msra.mxu0 %v598
    %856 = vmatprep.subr.bf16.mxu0 %v601
    %857 = vmatpush1.bf16.msra.mxu0 %v600
    %858 = vmatprep.subr.bf16.mxu0 %v603
    %859 = vmatpush1.bf16.msra.mxu0 %v602
    %860 = vmatprep.subr.bf16.mxu0 %v605
    %861 = vmatpush1.bf16.msra.mxu0 %v604
    %862 = vmatprep.subr.bf16.mxu0 %v607
    %863 = vmatpush1.bf16.msra.mxu0 %v606
    %864 = vmatprep.subr.bf16.mxu0 %v609
    %865 = vmatpush1.bf16.msra.mxu0 %v608
    %866 = vmatprep.subr.bf16.mxu0 %v611
    %867 = vmatpush1.bf16.msra.mxu0 %v610
    %868 = vmatprep.subr.bf16.mxu0 %v613
    %869 = vmatpush1.bf16.msra.mxu0 %v612
    %870 = vmatprep.subr.bf16.mxu0 %v615
    %871 = vmatpush1.bf16.msra.mxu0 %v614
    %872 = vmatprep.subr.bf16.mxu0 %v617
    %873 = vmatpush1.bf16.msra.mxu0 %v616
    %874 = vmatprep.subr.bf16.mxu0 %v619
    %875 = vmatpush1.bf16.msra.mxu0 %v618
    %876 = vmatprep.subr.bf16.mxu0 %v621
    %877 = vmatpush1.bf16.msra.mxu0 %v620
    %878 = vmatprep.mubr.bf16.mxu0 %v59
    %879 = vmatmul.mubr.bf16.gmra.mrb[0].mxu0 %v58
    %v880 = vpop.f32.mrb[0].mxu0
    %v881 = vadd.f32 %v199, %v880
    %v882 = vpop.f32.mrb[0].mxu0
    %v883 = vadd.f32 %v203, %v882
    %v884 = vpop.f32.mrb[0].mxu0
    %v885 = vadd.f32 %v199, %v884
    %v886 = vpop.f32.mrb[0].mxu0
    %v887 = vadd.f32 %v203, %v886
    %888 = vdwg.mxu0
    %889 = vmatprep.subr.bf16.mxu0 %v623
    %890 = vmatpush1.bf16.msra.mxu0 %v622
    %891 = vmatprep.subr.bf16.mxu0 %v625
    %892 = vmatpush1.bf16.msra.mxu0 %v624
    %893 = vmatprep.subr.bf16.mxu0 %v627
    %894 = vmatpush1.bf16.msra.mxu0 %v626
    %895 = vmatprep.subr.bf16.mxu0 %v629
    %896 = vmatpush1.bf16.msra.mxu0 %v628
    %897 = vmatprep.subr.bf16.mxu0 %v631
    %898 = vmatpush1.bf16.msra.mxu0 %v630
    %899 = vmatprep.subr.bf16.mxu0 %v633
    %900 = vmatpush1.bf16.msra.mxu0 %v632
    %901 = vmatprep.subr.bf16.mxu0 %v635
    %902 = vmatpush1.bf16.msra.mxu0 %v634
    %903 = vmatprep.subr.bf16.mxu0 %v637
    %904 = vmatpush1.bf16.msra.mxu0 %v636
    %905 = vmatprep.subr.bf16.mxu0 %v639
    %906 = vmatpush1.bf16.msra.mxu0 %v638
    %907 = vmatprep.subr.bf16.mxu0 %v641
    %908 = vmatpush1.bf16.msra.mxu0 %v640
    %909 = vmatprep.subr.bf16.mxu0 %v643
    %910 = vmatpush1.bf16.msra.mxu0 %v642
    %911 = vmatprep.subr.bf16.mxu0 %v645
    %912 = vmatpush1.bf16.msra.mxu0 %v644
    %913 = vmatprep.subr.bf16.mxu0 %v647
    %914 = vmatpush1.bf16.msra.mxu0 %v646
    %915 = vmatprep.subr.bf16.mxu0 %v649
    %916 = vmatpush1.bf16.msra.mxu0 %v648
    %917 = vmatprep.subr.bf16.mxu0 %v651
    %918 = vmatpush1.bf16.msra.mxu0 %v650
    %919 = vmatprep.subr.bf16.mxu0 %v653
    %920 = vmatpush1.bf16.msra.mxu0 %v652
    %921 = vmatprep.mubr.bf16.mxu0 %v61
    %922 = vmatmul.mubr.bf16.gmra.mrb[0].mxu0 %v60
    %v923 = vpop.f32.mrb[0].mxu0
    %v924 = vadd.f32 %v881, %v923
    %v925 = vpop.f32.mrb[0].mxu0
    %v926 = vadd.f32 %v883, %v925
    %v927 = vpop.f32.mrb[0].mxu0
    %v928 = vadd.f32 %v885, %v927
    %v929 = vpop.f32.mrb[0].mxu0
    %v930 = vadd.f32 %v887, %v929
    %931 = vdwg.mxu0
    %932 = vmatprep.subr.bf16.mxu0 %v655
    %933 = vmatpush1.bf16.msra.mxu0 %v654
    %934 = vmatprep.subr.bf16.mxu0 %v657
    %935 = vmatpush1.bf16.msra.mxu0 %v656
    %936 = vmatprep.subr.bf16.mxu0 %v659
    %937 = vmatpush1.bf16.msra.mxu0 %v658
    %938 = vmatprep.subr.bf16.mxu0 %v661
    %939 = vmatpush1.bf16.msra.mxu0 %v660
    %940 = vmatprep.subr.bf16.mxu0 %v663
    %941 = vmatpush1.bf16.msra.mxu0 %v662
    %942 = vmatprep.subr.bf16.mxu0 %v665
    %943 = vmatpush1.bf16.msra.mxu0 %v664
    %944 = vmatprep.subr.bf16.mxu0 %v667
    %945 = vmatpush1.bf16.msra.mxu0 %v666
    %946 = vmatprep.subr.bf16.mxu0 %v669
    %947 = vmatpush1.bf16.msra.mxu0 %v668
    %948 = vmatprep.subr.bf16.mxu0 %v671
    %949 = vmatpush1.bf16.msra.mxu0 %v670
    %950 = vmatprep.subr.bf16.mxu0 %v673
    %951 = vmatpush1.bf16.msra.mxu0 %v672
    %952 = vmatprep.subr.bf16.mxu0 %v675
    %953 = vmatpush1.bf16.msra.mxu0 %v674
    %954 = vmatprep.subr.bf16.mxu0 %v677
    %955 = vmatpush1.bf16.msra.mxu0 %v676
    %956 = vmatprep.subr.bf16.mxu0 %v679
    %957 = vmatpush1.bf16.msra.mxu0 %v678
    %958 = vmatprep.subr.bf16.mxu0 %v681
    %959 = vmatpush1.bf16.msra.mxu0 %v680
    %960 = vmatprep.subr.bf16.mxu0 %v683
    %961 = vmatpush1.bf16.msra.mxu0 %v682
    %962 = vmatprep.subr.bf16.mxu0 %v685
    %963 = vmatpush1.bf16.msra.mxu0 %v684
    %964 = vmatprep.mubr.bf16.mxu0 %v63
    %965 = vmatmul.mubr.bf16.gmra.mrb[0].mxu0 %v62
    %v966 = vpop.f32.mrb[0].mxu0
    %v967 = vadd.f32 %v924, %v966
    %v968 = vpop.f32.mrb[0].mxu0
    %v969 = vadd.f32 %v926, %v968
    %v970 = vpop.f32.mrb[0].mxu0
    %v971 = vadd.f32 %v928, %v970
    %v972 = vpop.f32.mrb[0].mxu0
    %v973 = vadd.f32 %v930, %v972
    %974 = vdwg.mxu0
    %975 = vmatprep.subr.bf16.mxu0 %v687
    %976 = vmatpush1.bf16.msra.mxu0 %v686
    %977 = vmatprep.subr.bf16.mxu0 %v689
    %978 = vmatpush1.bf16.msra.mxu0 %v688
    %979 = vmatprep.subr.bf16.mxu0 %v691
    %980 = vmatpush1.bf16.msra.mxu0 %v690
    %981 = vmatprep.subr.bf16.mxu0 %v693
    %982 = vmatpush1.bf16.msra.mxu0 %v692
    %983 = vmatprep.subr.bf16.mxu0 %v695
    %984 = vmatpush1.bf16.msra.mxu0 %v694
    %985 = vmatprep.subr.bf16.mxu0 %v697
    %986 = vmatpush1.bf16.msra.mxu0 %v696
    %987 = vmatprep.subr.bf16.mxu0 %v699
    %988 = vmatpush1.bf16.msra.mxu0 %v698
    %989 = vmatprep.subr.bf16.mxu0 %v701
    %990 = vmatpush1.bf16.msra.mxu0 %v700
    %991 = vmatprep.subr.bf16.mxu0 %v703
    %992 = vmatpush1.bf16.msra.mxu0 %v702
    %993 = vmatprep.subr.bf16.mxu0 %v705
    %994 = vmatpush1.bf16.msra.mxu0 %v704
    %995 = vmatprep.subr.bf16.mxu0 %v707
    %996 = vmatpush1.bf16.msra.mxu0 %v706
    %997 = vmatprep.subr.bf16.mxu0 %v709
    %998 = vmatpush1.bf16.msra.mxu0 %v708
    %999 = vmatprep.subr.bf16.mxu0 %v711
    %1000 = vmatpush1.bf16.msra.mxu0 %v710
    %1001 = vmatprep.subr.bf16.mxu0 %v713
    %1002 = vmatpush1.bf16.msra.mxu0 %v712
    %1003 = vmatprep.subr.bf16.mxu0 %v715
    %1004 = vmatpush1.bf16.msra.mxu0 %v714
    %1005 = vmatprep.subr.bf16.mxu0 %v717
    %1006 = vmatpush1.bf16.msra.mxu0 %v716
    %1007 = vmatprep.mubr.bf16.mxu0 %v65
    %1008 = vmatmul.mubr.bf16.gmra.mrb[0].mxu0 %v64
    %v1009 = vpop.f32.mrb[0].mxu0
    %v1010 = vadd.f32 %v967, %v1009
    %v1011 = vpop.f32.mrb[0].mxu0
    %v1012 = vadd.f32 %v969, %v1011
    %v1013 = vpop.f32.mrb[0].mxu0
    %v1014 = vadd.f32 %v971, %v1013
    %v1015 = vpop.f32.mrb[0].mxu0
    %v1016 = vadd.f32 %v973, %v1015
    %1017 = vdwg.mxu0
    %v1018 = vtanh.pop %v1010
    %v1019 = vtanh.pop %v1012
    %v1020 = vtanh.pop %v1014
    %v1021 = vtanh.pop %v1016
    %v1022 = vpack.c.bf16 %v1020, %v1018
    %v1023 = vpack.c.bf16 %v1021, %v1019
    %v1024 = vld [vmem:[%s3] sm:$0xff]
    %v1025 = vld [vmem:[%s3 + $0x8] sm:$0xff]
    %v1026 = vld [vmem:[%s3 + $0x10] sm:$0xff]
    %v1027 = vld [vmem:[%s3 + $0x18] sm:$0xff]
    %v1028 = vld [vmem:[%s3 + $0x20] sm:$0xff]
    %v1029 = vld [vmem:[%s3 + $0x28] sm:$0xff]
    %v1030 = vld [vmem:[%s3 + $0x30] sm:$0xff]
    %v1031 = vld [vmem:[%s3 + $0x38] sm:$0xff]
    %v1032 = vld [vmem:[%s3 + $0x40] sm:$0xff]
    %v1033 = vld [vmem:[%s3 + $0x48] sm:$0xff]
    %v1034 = vld [vmem:[%s3 + $0x50] sm:$0xff]
    %v1035 = vld [vmem:[%s3 + $0x58] sm:$0xff]
    %v1036 = vld [vmem:[%s3 + $0x60] sm:$0xff]
    %v1037 = vld [vmem:[%s3 + $0x68] sm:$0xff]
    %v1038 = vld [vmem:[%s3 + $0x70] sm:$0xff]
    %v1039 = vld [vmem:[%s3 + $0x78] sm:$0xff]
    %v1040 = vld [vmem:[%s3 + $0x80] sm:$0xff]
    %v1041 = vld [vmem:[%s3 + $0x88] sm:$0xff]
    %v1042 = vld [vmem:[%s3 + $0x90] sm:$0xff]
    %v1043 = vld [vmem:[%s3 + $0x98] sm:$0xff]
    %v1044 = vld [vmem:[%s3 + $0xa0] sm:$0xff]
    %v1045 = vld [vmem:[%s3 + $0xa8] sm:$0xff]
    %v1046 = vld [vmem:[%s3 + $0xb0] sm:$0xff]
    %v1047 = vld [vmem:[%s3 + $0xb8] sm:$0xff]
    %v1048 = vld [vmem:[%s3 + $0xc0] sm:$0xff]
    %v1049 = vld [vmem:[%s3 + $0xc8] sm:$0xff]
    %v1050 = vld [vmem:[%s3 + $0xd0] sm:$0xff]
    %v1051 = vld [vmem:[%s3 + $0xd8] sm:$0xff]
    %v1052 = vld [vmem:[%s3 + $0xe0] sm:$0xff]
    %v1053 = vld [vmem:[%s3 + $0xe8] sm:$0xff]
    %v1054 = vld [vmem:[%s3 + $0xf0] sm:$0xff]
    %v1055 = vld [vmem:[%s3 + $0xf8] sm:$0xff]
    %v1056 = vld [vmem:[%s4] sm:$0x3]
    %v1058 = vlaneseq
    %v1059 = vshrl.u32 %v1058, 7
    %v1060 = vsub.s32 0, %v1059
    %v1061 = vrot.slane %v1056, %v1060
    %v1062 = vlaneseq
    %v1063 = vshrl.u32 %v1062, 7
    %v1064 = vsub.s32 1, %v1063
    %v1065 = vrot.slane %v1056, %v1064
    %v1100 = vunpack.c.l.b16 %v1024
    %v1101 = vunpack.c.h.b16 %v1024
    %v1102 = vunpack.c.l.b16 %v1025
    %v1103 = vunpack.c.h.b16 %v1025
    %v1104 = vunpack.c.l.b16 %v1026
    %v1105 = vunpack.c.h.b16 %v1026
    %v1106 = vunpack.c.l.b16 %v1027
    %v1107 = vunpack.c.h.b16 %v1027
    %v1108 = vunpack.c.l.b16 %v1028
    %v1109 = vunpack.c.h.b16 %v1028
    %v1110 = vunpack.c.l.b16 %v1029
    %v1111 = vunpack.c.h.b16 %v1029
    %v1112 = vunpack.c.l.b16 %v1030
    %v1113 = vunpack.c.h.b16 %v1030
    %v1114 = vunpack.c.l.b16 %v1031
    %v1115 = vunpack.c.h.b16 %v1031
    %v1116 = vunpack.c.l.b16 %v1032
    %v1117 = vunpack.c.h.b16 %v1032
    %v1118 = vunpack.c.l.b16 %v1033
    %v1119 = vunpack.c.h.b16 %v1033
    %v1120 = vunpack.c.l.b16 %v1034
    %v1121 = vunpack.c.h.b16 %v1034
    %v1122 = vunpack.c.l.b16 %v1035
    %v1123 = vunpack.c.h.b16 %v1035
    %v1124 = vunpack.c.l.b16 %v1036
    %v1125 = vunpack.c.h.b16 %v1036
    %v1126 = vunpack.c.l.b16 %v1037
    %v1127 = vunpack.c.h.b16 %v1037
    %v1128 = vunpack.c.l.b16 %v1038
    %v1129 = vunpack.c.h.b16 %v1038
    %v1130 = vunpack.c.l.b16 %v1039
    %v1131 = vunpack.c.h.b16 %v1039
    %v1132 = vunpack.c.l.b16 %v1040
    %v1133 = vunpack.c.h.b16 %v1040
    %v1134 = vunpack.c.l.b16 %v1041
    %v1135 = vunpack.c.h.b16 %v1041
    %v1136 = vunpack.c.l.b16 %v1042
    %v1137 = vunpack.c.h.b16 %v1042
    %v1138 = vunpack.c.l.b16 %v1043
    %v1139 = vunpack.c.h.b16 %v1043
    %v1140 = vunpack.c.l.b16 %v1044
    %v1141 = vunpack.c.h.b16 %v1044
    %v1142 = vunpack.c.l.b16 %v1045
    %v1143 = vunpack.c.h.b16 %v1045
    %v1144 = vunpack.c.l.b16 %v1046
    %v1145 = vunpack.c.h.b16 %v1046
    %v1146 = vunpack.c.l.b16 %v1047
    %v1147 = vunpack.c.h.b16 %v1047
    %v1148 = vunpack.c.l.b16 %v1048
    %v1149 = vunpack.c.h.b16 %v1048
    %v1150 = vunpack.c.l.b16 %v1049
    %v1151 = vunpack.c.h.b16 %v1049
    %v1152 = vunpack.c.l.b16 %v1050
    %v1153 = vunpack.c.h.b16 %v1050
    %v1154 = vunpack.c.l.b16 %v1051
    %v1155 = vunpack.c.h.b16 %v1051
    %v1156 = vunpack.c.l.b16 %v1052
    %v1157 = vunpack.c.h.b16 %v1052
    %v1158 = vunpack.c.l.b16 %v1053
    %v1159 = vunpack.c.h.b16 %v1053
    %v1160 = vunpack.c.l.b16 %v1054
    %v1161 = vunpack.c.h.b16 %v1054
    %v1162 = vunpack.c.l.b16 %v1055
    %v1163 = vunpack.c.h.b16 %v1055
    %v1164 = vpack.c.b16 %v1102, %v1100
    %v1165 = vpack.c.b16 %v1103, %v1101
    %v1166 = vpack.c.b16 %v1106, %v1104
    %v1167 = vpack.c.b16 %v1107, %v1105
    %v1168 = vpack.c.b16 %v1110, %v1108
    %v1169 = vpack.c.b16 %v1111, %v1109
    %v1170 = vpack.c.b16 %v1114, %v1112
    %v1171 = vpack.c.b16 %v1115, %v1113
    %v1172 = vpack.c.b16 %v1118, %v1116
    %v1173 = vpack.c.b16 %v1119, %v1117
    %v1174 = vpack.c.b16 %v1122, %v1120
    %v1175 = vpack.c.b16 %v1123, %v1121
    %v1176 = vpack.c.b16 %v1126, %v1124
    %v1177 = vpack.c.b16 %v1127, %v1125
    %v1178 = vpack.c.b16 %v1130, %v1128
    %v1179 = vpack.c.b16 %v1131, %v1129
    %v1180 = vpack.c.b16 %v1134, %v1132
    %v1181 = vpack.c.b16 %v1135, %v1133
    %v1182 = vpack.c.b16 %v1138, %v1136
    %v1183 = vpack.c.b16 %v1139, %v1137
    %v1184 = vpack.c.b16 %v1142, %v1140
    %v1185 = vpack.c.b16 %v1143, %v1141
    %v1186 = vpack.c.b16 %v1146, %v1144
    %v1187 = vpack.c.b16 %v1147, %v1145
    %v1188 = vpack.c.b16 %v1150, %v1148
    %v1189 = vpack.c.b16 %v1151, %v1149
    %v1190 = vpack.c.b16 %v1154, %v1152
    %v1191 = vpack.c.b16 %v1155, %v1153
    %v1192 = vpack.c.b16 %v1158, %v1156
    %v1193 = vpack.c.b16 %v1159, %v1157
    %v1194 = vpack.c.b16 %v1162, %v1160
    %v1195 = vpack.c.b16 %v1163, %v1161
    %1228 = vmatprep.subr.bf16.mxu0 %v1165
    %1229 = vmatpush1.bf16.msra.mxu0 %v1164
    %1230 = vmatprep.subr.bf16.mxu0 %v1167
    %1231 = vmatpush1.bf16.msra.mxu0 %v1166
    %1232 = vmatprep.subr.bf16.mxu0 %v1169
    %1233 = vmatpush1.bf16.msra.mxu0 %v1168
    %1234 = vmatprep.subr.bf16.mxu0 %v1171
    %1235 = vmatpush1.bf16.msra.mxu0 %v1170
    %1236 = vmatprep.subr.bf16.mxu0 %v1173
    %1237 = vmatpush1.bf16.msra.mxu0 %v1172
    %1238 = vmatprep.subr.bf16.mxu0 %v1175
    %1239 = vmatpush1.bf16.msra.mxu0 %v1174
    %1240 = vmatprep.subr.bf16.mxu0 %v1177
    %1241 = vmatpush1.bf16.msra.mxu0 %v1176
    %1242 = vmatprep.subr.bf16.mxu0 %v1179
    %1243 = vmatpush1.bf16.msra.mxu0 %v1178
    %1244 = vmatprep.subr.bf16.mxu0 %v1181
    %1245 = vmatpush1.bf16.msra.mxu0 %v1180
    %1246 = vmatprep.subr.bf16.mxu0 %v1183
    %1247 = vmatpush1.bf16.msra.mxu0 %v1182
    %1248 = vmatprep.subr.bf16.mxu0 %v1185
    %1249 = vmatpush1.bf16.msra.mxu0 %v1184
    %1250 = vmatprep.subr.bf16.mxu0 %v1187
    %1251 = vmatpush1.bf16.msra.mxu0 %v1186
    %1252 = vmatprep.subr.bf16.mxu0 %v1189
    %1253 = vmatpush1.bf16.msra.mxu0 %v1188
    %1254 = vmatprep.subr.bf16.mxu0 %v1191
    %1255 = vmatpush1.bf16.msra.mxu0 %v1190
    %1256 = vmatprep.subr.bf16.mxu0 %v1193
    %1257 = vmatpush1.bf16.msra.mxu0 %v1192
    %1258 = vmatprep.subr.bf16.mxu0 %v1195
    %1259 = vmatpush1.bf16.msra.mxu0 %v1194
    %1260 = vmatprep.mubr.bf16.mxu0 %v1023
    %1261 = vmatmul.mubr.bf16.gmra.mrb[0].mxu0 %v1022
    %v1262 = vpop.f32.mrb[0].mxu0
    %v1263 = vadd.f32 %v1061, %v1262
    %v1264 = vpop.f32.mrb[0].mxu0
    %v1265 = vadd.f32 %v1065, %v1264
    %v1266 = vpop.f32.mrb[0].mxu0
    %v1267 = vadd.f32 %v1061, %v1266
    %v1268 = vpop.f32.mrb[0].mxu0
    %v1269 = vadd.f32 %v1065, %v1268
    %1270 = vdwg.mxu0
    %v1271 = vtanh.pop %v1263
    %v1272 = vtanh.pop %v1265
    %v1273 = vtanh.pop %v1267
    %v1274 = vtanh.pop %v1269
    %v1275 = vld [vmem:[%s5] sm:$0xff]
    %v1276 = vld [vmem:[%s5 + $0x8] sm:$0xff]
    %v1277 = vpack.c.bf16 %v1273, %v1271
    %v1278 = vpack.c.bf16 %v1274, %v1272
    %v1281 = vunpack.c.l.b16 %v1275
    %v1282 = vunpack.c.h.b16 %v1275
    %v1283 = vunpack.c.l.b16 %v1276
    %v1284 = vunpack.c.h.b16 %v1276
    %v1285 = vpack.c.b16 %v1283, %v1281
    %v1286 = vpack.c.b16 %v1284, %v1282
    %1289 = vmatprep.subr.bf16.mxu0 %v1278
    %1290 = vmatpush1.bf16.xpose.msra.mxu0 %v1277
    %1291 = vmatprep.subr.bf16.mxu0 0
    %1292 = vmatpush1.bf16.xpose.msra.mxu0 0
    %1293 = vmatprep.subr.bf16.mxu0 0
    %1294 = vmatpush1.bf16.xpose.msra.mxu0 0
    %1295 = vmatprep.subr.bf16.mxu0 0
    %1296 = vmatpush1.bf16.xpose.msra.mxu0 0
    %1297 = vmatprep.subr.bf16.mxu0 0
    %1298 = vmatpush1.bf16.xpose.msra.mxu0 0
    %1299 = vmatprep.subr.bf16.mxu0 0
    %1300 = vmatpush1.bf16.xpose.msra.mxu0 0
    %1301 = vmatprep.subr.bf16.mxu0 0
    %1302 = vmatpush1.bf16.xpose.msra.mxu0 0
    %1303 = vmatprep.subr.bf16.mxu0 0
    %1304 = vmatpush1.bf16.xpose.msra.mxu0 0
    %1305 = vmatprep.subr.bf16.mxu0 0
    %1306 = vmatpush1.bf16.xpose.msra.mxu0 0
    %1307 = vmatprep.subr.bf16.mxu0 0
    %1308 = vmatpush1.bf16.xpose.msra.mxu0 0
    %1309 = vmatprep.subr.bf16.mxu0 0
    %1310 = vmatpush1.bf16.xpose.msra.mxu0 0
    %1311 = vmatprep.subr.bf16.mxu0 0
    %1312 = vmatpush1.bf16.xpose.msra.mxu0 0
    %1313 = vmatprep.subr.bf16.mxu0 0
    %1314 = vmatpush1.bf16.xpose.msra.mxu0 0
    %1315 = vmatprep.subr.bf16.mxu0 0
    %1316 = vmatpush1.bf16.xpose.msra.mxu0 0
    %1317 = vmatprep.subr.bf16.mxu0 0
    %1318 = vmatpush1.bf16.xpose.msra.mxu0 0
    %1319 = vmatprep.subr.bf16.mxu0 0
    %1320 = vmatpush1.bf16.xpose.msra.mxu0 0
    %1321 = vmatprep.mubr.bf16.mxu0 %v1286
    %1322 = vmatmul.mubr.bf16.gmra.mrb[0].mxu0 %v1285
    %v1323 = vpop.f32.mrb[0].mxu0
    %v1324 = vadd.f32 0.0, %v1323
    %v1325 = vpop.f32.mrb[0].mxu0
    %v1326 = vpop.f32.mrb[0].mxu0
    %v1327 = vpop.f32.mrb[0].mxu0
    %1328 = vdwg.mxu0
    %s1329 = sld [smem:[#allocation2]]
    %v1330 = vstv %s1329
    %v1331 = vadd.f32 %v1324, %v1330
    %v1332 = vxor.u32 %v1331, 2147483648
    %v1333 = vmul.f32 %v1332, 1.442695
    %v1334 = vpow.pop %v1333
    %v1335 = vadd.f32 %v1334, 1.0
    %v1336 = vrcp.pop %v1335
    %v1337 = vmul.f32 1.0, %v1336
    %vm1338 = vcmask 122880
    %1339 = vst.msk [vmem:[%s7] sm:$0x1] %vm1338, %v1337
    // Predicated region
    $region34: #{perceptron_policy_forward.1} parent=1 // pred_check
      _
    $region35: #{perceptron_policy_forward.1} parent=1 // pred_check_branch
      %1341 = sbr.rel (0) target = $region37
    $region36: #{perceptron_policy_forward.1} parent=1 // pred_region
      _
    $region37: #{perceptron_policy_forward.1} parent=1 // pred_fallthru
      _
    // Predicated region
    $region38: #{perceptron_policy_forward.1} parent=1 // pred_check
      _
    $region39: #{perceptron_policy_forward.1} parent=1 // pred_check_branch
      %1343 = sbr.rel (0) target = $region41
    $region40: #{perceptron_policy_forward.1} parent=1 // pred_region
      _
    $region41: #{perceptron_policy_forward.1} parent=1 // pred_fallthru
      _
    %1344 = vsyncpa [#allocation4], 1

</llo_original>
